<compile_context>
chip_gen: v7x
topology: tpu7x:2x2x1
jax: 0.10.0
libtpu: 0.0.40
codegen_flags: <defaults>
</compile_context>

<pallas_src>
import jax
import jax.numpy as jnp
from jax.experimental import pallas as pl
from jax.experimental.pallas import tpu as pltpu

KSIZE = 4
STRIDE = 2
PAD = 1
BN_EPS = 1e-5
_LANE = 128


def _round_up(x, m):
    return (x + m - 1) // m * m


def _pick_tile_m(mp, k, cout, *, budget_bytes=24 * 1024 * 1024, cap=2048):
    """Largest tm (multiple of 128, divides mp, <= cap) whose double-buffered
    working set fits a conservative VMEM budget (headroom for v7x)."""
    best = _LANE
    tm = _LANE
    while tm <= min(mp, cap):
        if mp % tm == 0:
            need = 4 * (2 * k * tm + 4 * cout * tm + 2 * cout * k)
            if need <= budget_bytes:
                best = tm
        tm += _LANE
    return best


# ------------------------------------------------------------------ #
# Kernel 1: conv-as-matmul (lane-dense [Cout, M]) + fused BN partial  #
#           statistics (per-tile per-channel sum / sum-of-squares)    #
# ------------------------------------------------------------------ #
def _conv_stats_kernel(w_ref, p_ref, o_ref, s_ref):
    # w_ref: (Cout, K), p_ref: (K, tm)  ->  o_ref: (Cout, tm) lane-dense.
    y = jnp.dot(w_ref[...], p_ref[...], preferred_element_type=jnp.float32)
    o_ref[...] = y
    # Per-tile BN partial stats: col 0 = sum, col 1 = sum of squares.
    s_ref[...] = jnp.concatenate(
        [jnp.sum(y, axis=1, keepdims=True),
         jnp.sum(y * y, axis=1, keepdims=True)],
        axis=1,
    )


def conv_with_stats(w2, patches_t, *, tm):
    cout, k = w2.shape
    _, mp = patches_t.shape
    n_tiles = mp // tm
    return pl.pallas_call(
        _conv_stats_kernel,
        out_shape=(
            jax.ShapeDtypeStruct((cout, mp), jnp.float32),
            jax.ShapeDtypeStruct((n_tiles * cout, 2), jnp.float32),
        ),
        grid_spec=pltpu.PrefetchScalarGridSpec(
            num_scalar_prefetch=0,
            grid=(n_tiles,),
            in_specs=[
                pl.BlockSpec((cout, k), lambda i: (0, 0)),   # weights (full, resident)
                pl.BlockSpec((k, tm), lambda i: (0, i)),     # patch tile
            ],
            out_specs=(
                pl.BlockSpec((cout, tm), lambda i: (0, i)),  # conv tile (lane-dense)
                pl.BlockSpec((cout, 2), lambda i: (i, 0)),   # per-tile stats
            ),
        ),
        compiler_params=pltpu.CompilerParams(
            dimension_semantics=("parallel",),               # megacore shards M tiles
            vmem_limit_bytes=32 * 1024 * 1024,
        ),
    )(w2, patches_t)


# ------------------------------------------------------------------ #
# Kernel 2: tiled elementwise normalize (pre-folded scale/shift) + ELU #
# ------------------------------------------------------------------ #
def _bn_elu_kernel(y_ref, scale_ref, shift_ref, o_ref):
    z = y_ref[...] * scale_ref[...] + shift_ref[...]
    # ELU(alpha=1): z if z > 0 else exp(z) - 1  (all f32; v5e-safe)
    o_ref[...] = jnp.where(z > 0, z, jnp.expm1(z))


def bn_elu(conv_t, scale, shift, *, tm):
    cout, mp = conv_t.shape
    n_tiles = mp // tm
    return pl.pallas_call(
        _bn_elu_kernel,
        out_shape=jax.ShapeDtypeStruct((cout, mp), jnp.float32),
        grid_spec=pltpu.PrefetchScalarGridSpec(
            num_scalar_prefetch=0,
            grid=(n_tiles,),
            in_specs=[
                pl.BlockSpec((cout, tm), lambda i: (0, i)),
                pl.BlockSpec((cout, 1), lambda i: (0, 0)),
                pl.BlockSpec((cout, 1), lambda i: (0, 0)),
            ],
            out_specs=pl.BlockSpec((cout, tm), lambda i: (0, i)),
        ),
        compiler_params=pltpu.CompilerParams(
            dimension_semantics=("parallel",),
            vmem_limit_bytes=32 * 1024 * 1024,
        ),
    )(conv_t, scale, shift)


# ------------------------------------------------------------------ #
# Glue: slice-based im2col (transposed, [K, M]) + wrapper             #
# ------------------------------------------------------------------ #
def _im2col_t(x, k, s, p):
    """Patch matrix in [K, M] orientation built from strided slices (no gather).
    Row order (C, kh, kw) matches weight.reshape(Cout, Cin*KH*KW)."""
    n, c, h, w = x.shape
    ho = (h + 2 * p - k) // s + 1
    wo = (w + 2 * p - k) // s + 1
    xp = jnp.pad(x, ((0, 0), (0, 0), (p, p), (p, p)))
    taps = []
    for kh in range(k):
        for kw in range(k):
            taps.append(
                xp[:, :, kh:kh + s * (ho - 1) + 1:s, kw:kw + s * (wo - 1) + 1:s]
            )
    t = jnp.stack(taps, axis=0).reshape(k, k, n, c, ho, wo)
    t = t.transpose(3, 0, 1, 2, 4, 5)  # (C, kh, kw, N, Ho, Wo)
    return t.reshape(c * k * k, n * ho * wo), ho, wo


def conv_block_forward(x, weight, bias, gamma, beta, *, matmul_dtype=jnp.float32):
    """x: NCHW f32. weight: [Cout, Cin, KH, KW]. Returns NCHW f32.

    `bias` is accepted for API parity but folded out: with training-mode
    BatchNorm immediately after the conv, a per-channel constant bias is
    cancelled exactly by the batch-mean subtraction.
    """
    del bias
    n, cin, _, _ = x.shape
    cout = weight.shape[0]
    k = cin * KSIZE * KSIZE

    patches_t, ho, wo = _im2col_t(x, KSIZE, STRIDE, PAD)     # [K, M]
    m = n * ho * wo
    mp = _round_up(m, _LANE)
    if mp != m:
        patches_t = jnp.pad(patches_t, ((0, 0), (0, mp - m)))
    tm = _pick_tile_m(mp, k, cout)

    w2 = weight.reshape(cout, k)
    if matmul_dtype != jnp.float32:
        # Optional bf16 MXU path (v6e/v7x); accumulation stays f32 in-kernel.
        patches_t = patches_t.astype(matmul_dtype)
        w2 = w2.astype(matmul_dtype)

    conv_t, stats = conv_with_stats(w2, patches_t, tm=tm)    # [Cout, Mp], [T*Cout, 2]

    # Reduce tiny per-tile partial stats; fold gamma/beta into scale/shift.
    stats = stats.reshape(mp // tm, cout, 2).sum(axis=0)     # (Cout, 2)
    mean = stats[:, 0] / m
    var = jnp.maximum(stats[:, 1] / m - mean * mean, 0.0)    # biased var (PyTorch BN)
    inv_std = jax.lax.rsqrt(var + BN_EPS)
    scale = (gamma * inv_std).astype(jnp.float32).reshape(cout, 1)
    shift = (beta - mean * gamma * inv_std).astype(jnp.float32).reshape(cout, 1)

    out_t = bn_elu(conv_t, scale, shift, tm=tm)              # [Cout, Mp]
    out = out_t[:, :m].reshape(cout, n, ho, wo).transpose(1, 0, 2, 3)
    return out


# ------------------------------------------------------------------ #
# Pure-JAX reference (for verification)                               #
# ------------------------------------------------------------------ #
def reference_forward(x, weight, bias, gamma, beta):
    conv = jax.lax.conv_general_dilated(
        x, weight, window_strides=(STRIDE, STRIDE),
        padding=((PAD, PAD), (PAD, PAD)),
        dimension_numbers=("NCHW", "OIHW", "NCHW"),
    ) + bias[None, :, None, None]
    mean = jnp.mean(conv, axis=(0, 2, 3), keepdims=True)
    var = jnp.mean((conv - mean) ** 2, axis=(0, 2, 3), keepdims=True)
    y = (conv - mean) * jax.lax.rsqrt(var + BN_EPS)
    y = y * gamma[None, :, None, None] + beta[None, :, None, None]
    return jnp.where(y > 0, y, jnp.expm1(y))


if __name__ == "__main__":
    key = jax.random.PRNGKey(0)
    k_x, k_w, k_b, k_g, k_be = jax.random.split(key, 5)

    N, Cin, H, W = 2, 4, 16, 16
    Cout = 8

    x = jax.random.normal(k_x, (N, Cin, H, W), dtype=jnp.float32)
    weight = jax.random.normal(k_w, (Cout, Cin, KSIZE, KSIZE), dtype=jnp.float32) * 0.1
    bias = jax.random.normal(k_b, (Cout,), dtype=jnp.float32) * 0.1
    gamma = 1.0 + 0.1 * jax.random.normal(k_g, (Cout,), dtype=jnp.float32)
    beta = 0.1 * jax.random.normal(k_be, (Cout,), dtype=jnp.float32)

    out = conv_block_forward(x, weight, bias, gamma, beta)
    out = jax.block_until_ready(out)

    ref = jax.block_until_ready(reference_forward(x, weight, bias, gamma, beta))
    assert out.shape == (N, Cout, H // 2, W // 2), out.shape
    assert jnp.allclose(out, ref, atol=1e-4, rtol=1e-4), float(jnp.max(jnp.abs(out - ref)))

    print("KERNEL_OK")
</pallas_src>

<mosaic_0001>
module attributes {stable_mosaic.version = 11 : i64} {
  func.func @_conv_stats_kernel(%arg0: i32, %arg1: memref<8x64xf32, #tpu.memory_space<vmem>>, %arg2: memref<64x128xf32, #tpu.memory_space<vmem>>, %arg3: memref<8x128xf32, #tpu.memory_space<vmem>>, %arg4: memref<8x2xf32, #tpu.memory_space<vmem>>) attributes {dimension_semantics = [#tpu.dimension_semantics<parallel>], iteration_bounds = array<i64: 1>, scalar_prefetch = 0 : i64, scratch_operands = 0 : i64, tpu.core_type = #tpu.core_type<tc>, window_params = [{pipeline_mode = #tpu.pipeline_mode<synchronous>, transform_indices = @transform_0, window_bounds = array<i64: 8, 64>}, {transform_indices = @transform_1, window_bounds = array<i64: 64, 128>}, {transform_indices = @transform_2, window_bounds = array<i64: 8, 128>}, {transform_indices = @transform_3, window_bounds = array<i64: 8, 2>}]} {
    %c0 = arith.constant 0 : index
    %c0_0 = arith.constant 0 : index
    %0 = vector.load %arg1[%c0, %c0_0] : memref<8x64xf32, #tpu.memory_space<vmem>>, vector<8x64xf32>
    %c0_1 = arith.constant 0 : index
    %c0_2 = arith.constant 0 : index
    %1 = vector.load %arg2[%c0_1, %c0_2] : memref<64x128xf32, #tpu.memory_space<vmem>>, vector<64x128xf32>
    %cst = arith.constant dense<0.000000e+00> : vector<8x128xf32>
    %2 = tpu.matmul %0, %1, %cst {dimension_numbers = #tpu.dot_dimension_numbers<[1], [0], [0], [1], [0, 0, 1, 1], [], []>} : vector<8x64xf32>, vector<64x128xf32>, vector<8x128xf32> -> vector<8x128xf32>
    %c0_3 = arith.constant 0 : index
    %c0_4 = arith.constant 0 : index
    %3 = vector.load %arg3[%c0_3, %c0_4] : memref<8x128xf32, #tpu.memory_space<vmem>>, vector<8x128xf32>
    tpu.vector_store %arg3[%c0_3, %c0_4], %2 {strides = array<i32>} : memref<8x128xf32, #tpu.memory_space<vmem>>, vector<8x128xf32>,
    %cst_5 = arith.constant dense<0.000000e+00> : vector<8xf32>
    %4 = vector.multi_reduction <add>, %2, %cst_5 [1] : vector<8x128xf32> to vector<8xf32>
    %5 = vector.shape_cast %4 : vector<8xf32> to vector<8x1xf32>
    %6 = arith.mulf %2, %2 : vector<8x128xf32>
    %cst_6 = arith.constant dense<0.000000e+00> : vector<8xf32>
    %7 = vector.multi_reduction <add>, %6, %cst_6 [1] : vector<8x128xf32> to vector<8xf32>
    %8 = vector.shape_cast %7 : vector<8xf32> to vector<8x1xf32>
    %9 = tpu.concatenate %5, %8 in 1 : vector<8x1xf32>, vector<8x1xf32> -> vector<8x2xf32>
    %c0_7 = arith.constant 0 : index
    %c0_8 = arith.constant 0 : index
    %10 = vector.load %arg4[%c0_7, %c0_8] : memref<8x2xf32, #tpu.memory_space<vmem>>, vector<8x2xf32>
    tpu.vector_store %arg4[%c0_7, %c0_8], %9 {strides = array<i32>} : memref<8x2xf32, #tpu.memory_space<vmem>>, vector<8x2xf32>,
    return
  }
  func.func @transform_0(%arg0: i32) -> (i32, i32) {
    %c0_i32 = arith.constant 0 : i32
    %c0_i32_0 = arith.constant 0 : i32
    %c0_i32_1 = arith.constant 0 : i32
    return %c0_i32, %c0_i32_0 : i32, i32
  }
  func.func @transform_1(%arg0: i32) -> (i32, i32) {
    %c0_i32 = arith.constant 0 : i32
    %c0_i32_0 = arith.constant 0 : i32
    return %c0_i32, %arg0 : i32, i32
  }
  func.func @transform_2(%arg0: i32) -> (i32, i32) {
    %c0_i32 = arith.constant 0 : i32
    %c0_i32_0 = arith.constant 0 : i32
    return %c0_i32, %arg0 : i32, i32
  }
  func.func @transform_3(%arg0: i32) -> (i32, i32) {
    %c0_i32 = arith.constant 0 : i32
    %c0_i32_0 = arith.constant 0 : i32
    return %arg0, %c0_i32 : i32, i32
  }
}

</mosaic_0001>

<llo_original>
// kernel: tpu_custom_call.1
$region0: #{tpu_custom_call.1}
  #allocation0 [shape = 'u32[]', space=smem, size = 0x4, offset = 0x4, fixed_abs, tag = 'smem constant byte address 0x4 - core index']
  #allocation1 [shape = 'u32[144,128]{1,0:T(1,128)}', space=vmem, size = 0x12000, scoped, tag = 'internal scratch']
  %s0 = inlined_call_operand.hbm [shape: f32[8,64], index: 0, kind: input, shape index: {}]
  %s1 = inlined_call_operand.hbm [shape: f32[64,128], index: 1, kind: input, shape index: {}]
  %s2 = inlined_call_operand.hbm [shape: f32[8,128], index: 2, kind: output, shape index: {0}]
  %s3 = inlined_call_operand.vmem [shape: f32[8,2], index: 3, kind: output, shape index: {1}]
  %4 = xla_tuple %s2, %s3
  %s5 = sld [smem:[#allocation0]]
  $region34: #{tpu_custom_call.1} parent=0
    _
  %s7 = ssub.s32 1, %s5
  %s8 = scalar_select 0, %s7, %s5
  $region1: #{tpu_custom_call.1} parent=0
    #allocation2 [shape = 'u8[4096]{0}', space=vmem, size = 0x1000, scoped, tag = 'input window, operand 0, single buffered']
    #allocation3 [shape = 's32[1]{0}', space=sflag, size = 0x4, scoped, tag = 'scoped memory for tpu_custom_call.1']
    #allocation4 [shape = 's32[1]{0}', space=sflag, size = 0x4, scoped, tag = 'scoped memory for tpu_custom_call.1']
    #allocation5 [shape = 'u8[32768]{0}', space=vmem, size = 0x8000, scoped, tag = 'input window, operand 1, single buffered']
    #allocation6 [shape = 's32[1]{0}', space=sflag, size = 0x4, scoped, tag = 'scoped memory for tpu_custom_call.1']
    #allocation7 [shape = 'u8[4096]{0}', space=vmem, size = 0x1000, scoped, tag = 'output window, operand 0, single buffered']
    %9 = vsyncpa [#allocation3], 0
    %10 = vsyncpa [#allocation6], 0
    %11 = vsyncpa [#allocation4], 0
    // Predicated region
    $region2: #{tpu_custom_call.1} parent=1 // pred_check
      _
    $region3: #{tpu_custom_call.1} parent=1 // pred_check_branch
      %13 = sbr.rel (0) target = $region5
    $region4: #{tpu_custom_call.1} parent=1 // pred_region
      %s15 = ssub.s32 128, 128
      %16 = vsyncadd [#allocation3], %s15
      %s18 = sshll.u32 [#allocation2], 4
      %s19 = int_to_ptr.vmem [resolvable:$true] %s18
      %21 = dma.hbm_to_vmem [thread:$0]  %s0, 128, %s19, [#allocation3]
    $region5: #{tpu_custom_call.1} parent=1 // pred_fallthru
      _
    // Predicated region
    $region6: #{tpu_custom_call.1} parent=1 // pred_check
      _
    $region7: #{tpu_custom_call.1} parent=1 // pred_check_branch
      %23 = sbr.rel (0) target = $region9
    $region8: #{tpu_custom_call.1} parent=1 // pred_region
      %s25 = ssub.s32 1024, 1024
      %26 = vsyncadd [#allocation6], %s25
      %s27 = sshll.u32 [#allocation5], 4
      %s28 = int_to_ptr.vmem [resolvable:$true] %s27
      %33 = dma.hbm_to_vmem [thread:$0]  %s1, 1024, %s28, [#allocation6], 128, 128, 8
    $region9: #{tpu_custom_call.1} parent=1 // pred_fallthru
      _
    // Predicated region
    $region10: #{tpu_custom_call.1} parent=1 // pred_check
      _
    $region11: #{tpu_custom_call.1} parent=1 // pred_check_branch
      %35 = sbr.rel (0) target = $region13
    $region12: #{tpu_custom_call.1} parent=1 // pred_region
      %36 = dma.done [#allocation3], 128
    $region13: #{tpu_custom_call.1} parent=1 // pred_fallthru
      _
    // Predicated region
    $region14: #{tpu_custom_call.1} parent=1 // pred_check
      _
    $region15: #{tpu_custom_call.1} parent=1 // pred_check_branch
      %38 = sbr.rel (0) target = $region17
    $region16: #{tpu_custom_call.1} parent=1 // pred_region
      %39 = dma.done [#allocation6], 1024
    $region17: #{tpu_custom_call.1} parent=1 // pred_fallthru
      _
    %v40 = vld [vmem:[#allocation2] sm:$0xff]
    %v41 = vld [vmem:[#allocation5] sm:$0xff]
    %v42 = vld [vmem:[#allocation5 + $0x8] sm:$0xff]
    %v43 = vld [vmem:[#allocation5 + $0x10] sm:$0xff]
    %v44 = vld [vmem:[#allocation5 + $0x18] sm:$0xff]
    %v45 = vld [vmem:[#allocation5 + $0x20] sm:$0xff]
    %v46 = vld [vmem:[#allocation5 + $0x28] sm:$0xff]
    %v47 = vld [vmem:[#allocation5 + $0x30] sm:$0xff]
    %v48 = vld [vmem:[#allocation5 + $0x38] sm:$0xff]
    %vm49 = vcmask 523264
    %v51 = vsel %vm49, %v40, 0
    %53 = vmatprep.subr.mxu0 0.0
    %54 = vmatpush1.msra.mxu0 %v41
    %55 = vmatprep.subr.mxu0 0.0
    %56 = vmatpush1.msra.mxu0 %v42
    %57 = vmatprep.subr.mxu0 0.0
    %58 = vmatpush1.msra.mxu0 %v43
    %59 = vmatprep.subr.mxu0 0.0
    %60 = vmatpush1.msra.mxu0 %v44
    %61 = vmatprep.subr.mxu0 0.0
    %62 = vmatpush1.msra.mxu0 %v45
    %63 = vmatprep.subr.mxu0 0.0
    %64 = vmatpush1.msra.mxu0 %v46
    %65 = vmatprep.subr.mxu0 0.0
    %66 = vmatpush1.msra.mxu0 %v47
    %67 = vmatprep.subr.mxu0 0.0
    %68 = vmatpush1.msra.mxu0 %v48
    %69 = vmatprep.subr.mxu0 0.0
    %70 = vmatpush1.msra.mxu0 0.0
    %71 = vmatprep.subr.mxu0 0.0
    %72 = vmatpush1.msra.mxu0 0.0
    %73 = vmatprep.subr.mxu0 0.0
    %74 = vmatpush1.msra.mxu0 0.0
    %75 = vmatprep.subr.mxu0 0.0
    %76 = vmatpush1.msra.mxu0 0.0
    %77 = vmatprep.subr.mxu0 0.0
    %78 = vmatpush1.msra.mxu0 0.0
    %79 = vmatprep.subr.mxu0 0.0
    %80 = vmatpush1.msra.mxu0 0.0
    %81 = vmatprep.subr.mxu0 0.0
    %82 = vmatpush1.msra.mxu0 0.0
    %83 = vmatprep.subr.mxu0 0.0
    %84 = vmatpush1.msra.mxu0 0.0
    %85 = vmatprep.subr.mxu0 0.0
    %86 = vmatpush1.msra.mxu0 0.0
    %87 = vmatprep.subr.mxu0 0.0
    %88 = vmatpush1.msra.mxu0 0.0
    %89 = vmatprep.subr.mxu0 0.0
    %90 = vmatpush1.msra.mxu0 0.0
    %91 = vmatprep.subr.mxu0 0.0
    %92 = vmatpush1.msra.mxu0 0.0
    %93 = vmatprep.subr.mxu0 0.0
    %94 = vmatpush1.msra.mxu0 0.0
    %95 = vmatprep.subr.mxu0 0.0
    %96 = vmatpush1.msra.mxu0 0.0
    %97 = vmatprep.subr.mxu0 0.0
    %98 = vmatpush1.msra.mxu0 0.0
    %99 = vmatprep.subr.mxu0 0.0
    %100 = vmatpush1.msra.mxu0 0.0
    %101 = vmatprep.subr.mxu0 0.0
    %102 = vmatpush1.msra.mxu0 0.0
    %103 = vmatprep.subr.mxu0 0.0
    %104 = vmatpush1.msra.mxu0 0.0
    %105 = vmatprep.subr.mxu0 0.0
    %106 = vmatpush1.msra.mxu0 0.0
    %107 = vmatprep.subr.mxu0 0.0
    %108 = vmatpush1.msra.mxu0 0.0
    %109 = vmatprep.subr.mxu0 0.0
    %110 = vmatpush1.msra.mxu0 0.0
    %111 = vmatprep.subr.mxu0 0.0
    %112 = vmatpush1.msra.mxu0 0.0
    %113 = vmatprep.subr.mxu0 0.0
    %114 = vmatpush1.msra.mxu0 0.0
    %115 = vmatprep.subr.mxu0 0.0
    %116 = vmatpush1.msra.mxu0 0.0
    %117 = vmatprep.mubr.f32.mxu0 0.0
    %118 = vmatmul.mubr.f32.gmra.mrb[0].mxu0 %v51
    %v119 = vpop.f32.mrb[0].mxu0
    %v120 = vadd.f32 0.0, %v119
    %v121 = vpop.f32.mrb[0].mxu0
    %122 = vdwg.mxu0
    %123 = vst [vmem:[#allocation7] sm:$0xff] %v120
    %124 = vadd.xlane.f32.xlu0 %v120
    %v125 = vpop.xlane.xlu0 %124
    %v126 = vmul.f32 %v120, %v120
    %127 = vadd.xlane.f32.xlu0 %v126
    %v128 = vpop.xlane.xlu0 %127
    %vm129 = vcmask 7168
    %v130 = vsel %vm129, %v125, %v128
    %vm131 = vcmask 15360
    %132 = vst.msk [vmem:[%s3] sm:$0xff] %vm131, %v130
    // Predicated region
    $region18: #{tpu_custom_call.1} parent=1 // pred_check
      _
    $region19: #{tpu_custom_call.1} parent=1 // pred_check_branch
      %134 = sbr.rel (0) target = $region21
    $region20: #{tpu_custom_call.1} parent=1 // pred_region
      %s136 = ssub.s32 128, 128
      %137 = vsyncadd [#allocation4], %s136
      %s139 = sshll.u32 [#allocation7], 4
      %s140 = int_to_ptr.vmem [resolvable:$true] %s139
      %142 = dma.vmem_to_hbm [thread:$0]  %s140, 128, %s2, [#allocation4]
    $region21: #{tpu_custom_call.1} parent=1 // pred_fallthru
      _
    // Predicated region
    $region22: #{tpu_custom_call.1} parent=1 // pred_check
      _
    $region23: #{tpu_custom_call.1} parent=1 // pred_check_branch
      %144 = sbr.rel (0) target = $region25
    $region24: #{tpu_custom_call.1} parent=1 // pred_region
      _
    $region25: #{tpu_custom_call.1} parent=1 // pred_fallthru
      _
    // Predicated region
    $region26: #{tpu_custom_call.1} parent=1 // pred_check
      _
    $region27: #{tpu_custom_call.1} parent=1 // pred_check_branch
      %146 = sbr.rel (0) target = $region29
    $region28: #{tpu_custom_call.1} parent=1 // pred_region
      %147 = dma.done [#allocation4], 128
    $region29: #{tpu_custom_call.1} parent=1 // pred_fallthru
      _
    // Predicated region
    $region30: #{tpu_custom_call.1} parent=1 // pred_check
      _
    $region31: #{tpu_custom_call.1} parent=1 // pred_check_branch
      %149 = sbr.rel (0) target = $region33
    $region32: #{tpu_custom_call.1} parent=1 // pred_region
      _
    $region33: #{tpu_custom_call.1} parent=1 // pred_fallthru
      _
    %150 = vsyncpa [#allocation3], 1
    %151 = vsyncpa [#allocation6], 1
    %152 = vsyncpa [#allocation4], 1

</llo_original>
